<compile_context>
chip_gen: v7x
topology: tpu7x:2x2x1
jax: 0.10.0
libtpu: 0.0.40
codegen_flags: <defaults>
</compile_context>

<pallas_src>
import functools
import math

import jax
import jax.numpy as jnp
from jax import lax
from jax.experimental import pallas as pl
from jax.experimental.pallas import tpu as pltpu


def _round_up(x, m):
    return ((x + m - 1) // m) * m


def alignment_cnn_kernel(idx_ref, ecat_t_ref, b1_ref, b2_ref, wd_t_ref,
                         bd_ref, out_ref, *, tb, n_words, vocab, knum):
    """One grid step = TB doc pairs, computed feature-major (lane-dense).

    Lane index r = l * (2*tb) + s : word l of sample s; samples s < tb are the
    q docs of this block, s >= tb the a docs.
    """
    L, V, K = n_words, vocab, knum
    S = 2 * tb                       # samples per block (q docs + a docs)
    rows = S * L                     # lanes of the gathered activation tile

    # ---- fused gather + conv projections: one (3K, V) x (V, rows) GEMM ------
    idx = idx_ref[0]                                             # (1, rows) i32
    vio = lax.broadcasted_iota(jnp.int32, (V, rows), 0)
    onehot_t = (vio == idx).astype(jnp.float32)                  # (V, rows)
    # y_t[c, r] = Ecat[idx[r], c]; exact (single non-zero per one-hot column).
    y_t = jnp.dot(ecat_t_ref[...], onehot_t,
                  preferred_element_type=jnp.float32)            # (3K, rows)

    # ---- encoder_0: Conv2d(1, K, (1, H)) -> relu -> max over L words --------
    c1 = jnp.maximum(y_t[0 * K:1 * K, :] + b1_ref[...], 0.0)     # (K, rows)
    p1 = c1[:, 0:S]
    for l in range(1, L):
        p1 = jnp.maximum(p1, c1[:, l * S:(l + 1) * S])           # (K, S)

    # ---- encoder_1: Conv2d(1, K, (2, H)) -> relu -> max over L-1 positions --
    # Word l and word l+1 of the same sample are exactly one S-wide, 128-
    # aligned lane slab apart, so the height-2 conv is an aligned slab add
    # that never crosses a sample boundary.
    ua = y_t[1 * K:2 * K, :]
    ub = y_t[2 * K:3 * K, :]
    b2 = b2_ref[...]
    p2 = None
    for l in range(L - 1):
        c2 = jnp.maximum(ua[:, l * S:(l + 1) * S]
                         + ub[:, (l + 1) * S:(l + 2) * S] + b2, 0.0)
        p2 = c2 if p2 is None else jnp.maximum(p2, c2)           # (K, S)

    # dropout = eval-mode identity; the module's relu on the (already non-
    # negative) pooled features is an identity and is dropped.

    # ---- dense(4K -> 2) + LogSoftmax(dim=1), lane-dense all the way ---------
    feats = jnp.concatenate([p1[:, :tb], p2[:, :tb],
                             p1[:, tb:], p2[:, tb:]], axis=0)    # (4K, tb)
    logits = (jnp.dot(wd_t_ref[...], feats,
                      preferred_element_type=jnp.float32)
              + bd_ref[...])                                     # (2, tb)
    m = jnp.max(logits, axis=0, keepdims=True)
    lse = m + jnp.log(jnp.sum(jnp.exp(logits - m), axis=0, keepdims=True))
    out_ref[...] = logits - lse                                  # (2, tb)


def alignment_cnn_forward(q_idx, a_idx, encoding, params, block_b=256):
    """Batched forward.

    q_idx / a_idx: (B, L) int32 word-row indices into `encoding`
    encoding:      (V, H) = adj @ embedding ("layer1")
    Returns (B, 2) log-probabilities.
    """
    w1, b1, w2a, w2b, b2, wd, bd = params
    B, L = q_idx.shape
    V, H = encoding.shape
    K = w1.shape[1]
    assert L >= 2, "encoder_1 (filter height 2) needs at least 2 words"

    # ---- hoisted conv projections (one-off, full precision) -----------------
    hp = lax.Precision.HIGHEST
    ecat = jnp.concatenate([jnp.dot(encoding, w1, precision=hp),
                            jnp.dot(encoding, w2a, precision=hp),
                            jnp.dot(encoding, w2b, precision=hp)],
                           axis=1)                               # (V, 3K)
    ecat_t = ecat.T                                              # (3K, V)
    b1_t = b1.T                                                  # (K, 1)
    b2_t = b2.T                                                  # (K, 1)
    wd_t = wd.T                                                  # (2, 4K)
    bd_t = bd.T                                                  # (2, 1)

    # ---- block-size selection: 128-granular (aligned slabs / output blocks);
    # aim for >= 2 grid steps when B is large enough so a v7x megacore can
    # split the "parallel" batch axis over both TensorCores. -----------------
    block_b = max(128, _round_up(block_b, 128))
    TB = min(block_b, max(128, _round_up(-(-B // 2), 128)))
    B_pad = _round_up(B, TB)
    nb = B_pad // TB
    rows = 2 * TB * L

    # ---- pack indices as one lane-major row per block: r = l*(2*TB) + s -----
    def pad(ix):
        return jnp.pad(ix.astype(jnp.int32), ((0, B_pad - B), (0, 0)))

    qb = pad(q_idx).reshape(nb, TB, L)
    ab = pad(a_idx).reshape(nb, TB, L)
    cat = jnp.concatenate([qb, ab], axis=1)                      # (nb, 2TB, L)
    packed_idx = jnp.transpose(cat, (0, 2, 1)).reshape(nb, 1, rows)

    def resident(arr):       # weights stay resident across the grid
        return pl.BlockSpec(arr.shape, lambda b: (0,) * arr.ndim)

    kernel = functools.partial(alignment_cnn_kernel, tb=TB, n_words=L,
                               vocab=V, knum=K)

    cost = pl.CostEstimate(
        flops=2 * 3 * K * V * nb * rows + 2 * 2 * 4 * K * B_pad,
        transcendentals=3 * B_pad,
        bytes_accessed=4 * nb * rows + 8 * B_pad
        + 4 * (3 * K * V + 2 * K + 8 * K + 2),
    )

    out = pl.pallas_call(
        kernel,
        out_shape=jax.ShapeDtypeStruct((2, B_pad), jnp.float32),
        grid_spec=pltpu.PrefetchScalarGridSpec(
            num_scalar_prefetch=0,
            grid=(nb,),
            in_specs=[
                pl.BlockSpec((1, 1, rows), lambda b: (b, 0, 0)),  # word indices
                resident(ecat_t),
                resident(b1_t), resident(b2_t),
                resident(wd_t), resident(bd_t),
            ],
            out_specs=pl.BlockSpec((2, TB), lambda b: (0, b)),    # lane-dense
        ),
        compiler_params=pltpu.CompilerParams(
            dimension_semantics=("parallel",)),
        cost_estimate=cost,
    )(packed_idx, ecat_t, b1_t, b2_t, wd_t, bd_t)
    return out[:, :B].T


def reference_forward(q_idx, a_idx, encoding, params):
    """Pure-JAX mirror of the module's per-sample loop (eval mode).

    The module also computes soft attention (EQ/EA) and squared-diff/product
    features inside this loop; they never reach `predict` (dead code), so the
    output below is identical to the module's.
    """
    w1, b1, w2a, w2b, b2, wd, bd = params
    hp = lax.Precision.HIGHEST
    outs = []
    for i in range(q_idx.shape[0]):
        q = encoding[q_idx[i]]                       # Q[i]  (L, H)
        a = encoding[a_idx[i]]                       # A[i]  (L, H)

        def enc(x):
            # Conv2d(1, K, (1, H)) -> relu -> max-pool over height
            c1 = jax.nn.relu(jnp.dot(x, w1, precision=hp) + b1)
            p1 = jnp.max(c1, axis=0, keepdims=True)
            # Conv2d(1, K, (2, H)) -> relu -> max-pool over height
            c2 = jax.nn.relu(jnp.dot(x[:-1], w2a, precision=hp)
                             + jnp.dot(x[1:], w2b, precision=hp) + b2)
            p2 = jnp.max(c2, axis=0, keepdims=True)
            # dropout(eval) = identity
            return jax.nn.relu(jnp.concatenate([p1, p2], axis=1))

        re = jnp.concatenate([enc(q), enc(a)], axis=1)
        logits = jnp.dot(re, wd, precision=hp) + bd
        outs.append(jax.nn.log_softmax(logits, axis=1))
    return jnp.concatenate(outs, axis=0)


if __name__ == "__main__":
    # Small shapes consistent with the module: 32 graph nodes, hidden=32,
    # kernel_num=8, batch of 2 doc pairs, 8 attribute words per doc.
    input_dim, hidden_dim, kernel_num = 32, 32, 8
    B, L = 2, 8

    key = jax.random.PRNGKey(0)
    keys = jax.random.split(key, 11)

    # embedding (xavier_uniform_-style) + featureless GCN layer:
    # pre_matrix = A, layer1 = A @ embedding.  One-off global matmul over all
    # nodes, done in plain-JAX glue (not per sample).
    bound = math.sqrt(6.0 / (input_dim + hidden_dim))
    embedding = jax.random.uniform(keys[0], (input_dim, hidden_dim),
                                   jnp.float32, -bound, bound)
    adj = (jax.random.uniform(keys[1], (input_dim, input_dim)) < 0.2)
    adj = adj.astype(jnp.float32) + jnp.eye(input_dim, dtype=jnp.float32)
    adj = adj / jnp.sum(adj, axis=1, keepdims=True)           # row-normalized
    encoding = jnp.dot(adj, embedding)                        # "layer1" (V, H)

    # Conv / dense parameters (shapes match the PyTorch module):
    #   encoder_0: Conv2d(1, K, (1, H)) -> W1 (H, K), b1 (1, K)
    #   encoder_1: Conv2d(1, K, (2, H)) -> W2a/W2b (H, K) = kernel rows 0/1, b2
    #   dense: Linear(4K, 2) -> Wd (4K, 2), bd (1, 2)
    w1 = jax.random.uniform(keys[2], (hidden_dim, kernel_num), jnp.float32, -0.1, 0.1)
    b1 = jax.random.uniform(keys[3], (1, kernel_num), jnp.float32, -0.1, 0.1)
    w2a = jax.random.uniform(keys[4], (hidden_dim, kernel_num), jnp.float32, -0.1, 0.1)
    w2b = jax.random.uniform(keys[5], (hidden_dim, kernel_num), jnp.float32, -0.1, 0.1)
    b2 = jax.random.uniform(keys[6], (1, kernel_num), jnp.float32, -0.1, 0.1)
    wd = jax.random.uniform(keys[7], (kernel_num * 2 * 2, 2), jnp.float32, -0.1, 0.1)
    bd = jax.random.uniform(keys[8], (1, 2), jnp.float32, -0.1, 0.1)
    params = (w1, b1, w2a, w2b, b2, wd, bd)

    # TODO(synk): the doc_att / att_words dict lookups of the PyTorch model are
    # host-side Python bookkeeping with variable-length word lists; modeled
    # here as fixed-length (B, L) index arrays per document.
    q_idx = jax.random.randint(keys[9], (B, L), 0, input_dim, dtype=jnp.int32)
    a_idx = jax.random.randint(keys[10], (B, L), 0, input_dim, dtype=jnp.int32)

    out = alignment_cnn_forward(q_idx, a_idx, encoding, params)
    out = jax.block_until_ready(out)

    ref = reference_forward(q_idx, a_idx, encoding, params)
    assert out.shape == (B, 2), out.shape
    assert jnp.allclose(out, ref, rtol=1e-3, atol=1e-3), (out, ref)
    print("KERNEL_OK")
</pallas_src>

<mosaic_0001>
module attributes {stable_mosaic.version = 11 : i64} {
  func.func @alignment_cnn_kernel(%arg0: i32, %arg1: memref<1x1x2048xi32, #tpu.memory_space<vmem>>, %arg2: memref<24x32xf32, #tpu.memory_space<vmem>>, %arg3: memref<8x1xf32, #tpu.memory_space<vmem>>, %arg4: memref<8x1xf32, #tpu.memory_space<vmem>>, %arg5: memref<2x32xf32, #tpu.memory_space<vmem>>, %arg6: memref<2x1xf32, #tpu.memory_space<vmem>>, %arg7: memref<2x128xf32, #tpu.memory_space<vmem>>) attributes {dimension_semantics = [#tpu.dimension_semantics<parallel>], iteration_bounds = array<i64: 1>, scalar_prefetch = 0 : i64, scratch_operands = 0 : i64, tpu.core_type = #tpu.core_type<tc>, window_params = [{transform_indices = @transform_0, window_bounds = array<i64: 1, 1, 2048>}, {pipeline_mode = #tpu.pipeline_mode<synchronous>, transform_indices = @transform_1, window_bounds = array<i64: 24, 32>}, {pipeline_mode = #tpu.pipeline_mode<synchronous>, transform_indices = @transform_2, window_bounds = array<i64: 8, 1>}, {pipeline_mode = #tpu.pipeline_mode<synchronous>, transform_indices = @transform_3, window_bounds = array<i64: 8, 1>}, {pipeline_mode = #tpu.pipeline_mode<synchronous>, transform_indices = @transform_4, window_bounds = array<i64: 2, 32>}, {pipeline_mode = #tpu.pipeline_mode<synchronous>, transform_indices = @transform_5, window_bounds = array<i64: 2, 1>}, {transform_indices = @transform_6, window_bounds = array<i64: 2, 128>}]} {
    %c0 = arith.constant 0 : index
    %c0_0 = arith.constant 0 : index
    %c0_1 = arith.constant 0 : index
    %0 = vector.load %arg1[%c0, %c0_0, %c0_1] : memref<1x1x2048xi32, #tpu.memory_space<vmem>>, vector<1x1x2048xi32>
    %1 = vector.shape_cast %0 : vector<1x1x2048xi32> to vector<1x2048xi32>
    %2 = tpu.iota {dimensions = array<i32: 0>} : vector<32x2048xi32>
    %3 = vector.broadcast %1 : vector<1x2048xi32> to vector<32x2048xi32>
    %4 = arith.cmpi eq, %2, %3 : vector<32x2048xi32>
    %5 = arith.extui %4 : vector<32x2048xi1> to vector<32x2048xi32>
    %6 = arith.sitofp %5 : vector<32x2048xi32> to vector<32x2048xf32>
    %c0_2 = arith.constant 0 : index
    %c0_3 = arith.constant 0 : index
    %7 = vector.load %arg2[%c0_2, %c0_3] : memref<24x32xf32, #tpu.memory_space<vmem>>, vector<24x32xf32>
    %cst = arith.constant dense<0.000000e+00> : vector<24x2048xf32>
    %8 = tpu.matmul %7, %6, %cst {dimension_numbers = #tpu.dot_dimension_numbers<[1], [0], [0], [1], [0, 0, 1, 1], [], []>} : vector<24x32xf32>, vector<32x2048xf32>, vector<24x2048xf32> -> vector<24x2048xf32>
    %9 = vector.extract_strided_slice %8 {offsets = [0, 0], sizes = [8, 2048], strides = [1, 1]} : vector<24x2048xf32> to vector<8x2048xf32>
    %c0_4 = arith.constant 0 : index
    %c0_5 = arith.constant 0 : index
    %10 = vector.load %arg3[%c0_4, %c0_5] : memref<8x1xf32, #tpu.memory_space<vmem>>, vector<8x1xf32>
    %11 = vector.broadcast %10 : vector<8x1xf32> to vector<8x2048xf32>
    %12 = arith.addf %9, %11 : vector<8x2048xf32>
    %cst_6 = arith.constant 0.000000e+00 : f32
    %13 = vector.broadcast %cst_6 : f32 to vector<8x2048xf32>
    %14 = arith.maximumf %12, %13 : vector<8x2048xf32>
    %15 = vector.extract_strided_slice %14 {offsets = [0, 0], sizes = [8, 256], strides = [1, 1]} : vector<8x2048xf32> to vector<8x256xf32>
    %16 = vector.extract_strided_slice %14 {offsets = [0, 256], sizes = [8, 256], strides = [1, 1]} : vector<8x2048xf32> to vector<8x256xf32>
    %17 = arith.maximumf %15, %16 : vector<8x256xf32>
    %18 = vector.extract_strided_slice %14 {offsets = [0, 512], sizes = [8, 256], strides = [1, 1]} : vector<8x2048xf32> to vector<8x256xf32>
    %19 = arith.maximumf %17, %18 : vector<8x256xf32>
    %20 = vector.extract_strided_slice %14 {offsets = [0, 768], sizes = [8, 256], strides = [1, 1]} : vector<8x2048xf32> to vector<8x256xf32>
    %21 = arith.maximumf %19, %20 : vector<8x256xf32>
    %22 = vector.extract_strided_slice %14 {offsets = [0, 1024], sizes = [8, 256], strides = [1, 1]} : vector<8x2048xf32> to vector<8x256xf32>
    %23 = arith.maximumf %21, %22 : vector<8x256xf32>
    %24 = vector.extract_strided_slice %14 {offsets = [0, 1280], sizes = [8, 256], strides = [1, 1]} : vector<8x2048xf32> to vector<8x256xf32>
    %25 = arith.maximumf %23, %24 : vector<8x256xf32>
    %26 = vector.extract_strided_slice %14 {offsets = [0, 1536], sizes = [8, 256], strides = [1, 1]} : vector<8x2048xf32> to vector<8x256xf32>
    %27 = arith.maximumf %25, %26 : vector<8x256xf32>
    %28 = vector.extract_strided_slice %14 {offsets = [0, 1792], sizes = [8, 256], strides = [1, 1]} : vector<8x2048xf32> to vector<8x256xf32>
    %29 = arith.maximumf %27, %28 : vector<8x256xf32>
    %30 = vector.extract_strided_slice %8 {offsets = [8, 0], sizes = [8, 2048], strides = [1, 1]} : vector<24x2048xf32> to vector<8x2048xf32>
    %31 = vector.extract_strided_slice %8 {offsets = [16, 0], sizes = [8, 2048], strides = [1, 1]} : vector<24x2048xf32> to vector<8x2048xf32>
    %c0_7 = arith.constant 0 : index
    %c0_8 = arith.constant 0 : index
    %32 = vector.load %arg4[%c0_7, %c0_8] : memref<8x1xf32, #tpu.memory_space<vmem>>, vector<8x1xf32>
    %33 = vector.extract_strided_slice %30 {offsets = [0, 0], sizes = [8, 256], strides = [1, 1]} : vector<8x2048xf32> to vector<8x256xf32>
    %34 = vector.extract_strided_slice %31 {offsets = [0, 256], sizes = [8, 256], strides = [1, 1]} : vector<8x2048xf32> to vector<8x256xf32>
    %35 = arith.addf %33, %34 : vector<8x256xf32>
    %36 = vector.broadcast %32 : vector<8x1xf32> to vector<8x256xf32>
    %37 = arith.addf %35, %36 : vector<8x256xf32>
    %cst_9 = arith.constant 0.000000e+00 : f32
    %38 = vector.broadcast %cst_9 : f32 to vector<8x256xf32>
    %39 = arith.maximumf %37, %38 : vector<8x256xf32>
    %40 = vector.extract_strided_slice %30 {offsets = [0, 256], sizes = [8, 256], strides = [1, 1]} : vector<8x2048xf32> to vector<8x256xf32>
    %41 = vector.extract_strided_slice %31 {offsets = [0, 512], sizes = [8, 256], strides = [1, 1]} : vector<8x2048xf32> to vector<8x256xf32>
    %42 = arith.addf %40, %41 : vector<8x256xf32>
    %43 = vector.broadcast %32 : vector<8x1xf32> to vector<8x256xf32>
    %44 = arith.addf %42, %43 : vector<8x256xf32>
    %cst_10 = arith.constant 0.000000e+00 : f32
    %45 = vector.broadcast %cst_10 : f32 to vector<8x256xf32>
    %46 = arith.maximumf %44, %45 : vector<8x256xf32>
    %47 = arith.maximumf %39, %46 : vector<8x256xf32>
    %48 = vector.extract_strided_slice %30 {offsets = [0, 512], sizes = [8, 256], strides = [1, 1]} : vector<8x2048xf32> to vector<8x256xf32>
    %49 = vector.extract_strided_slice %31 {offsets = [0, 768], sizes = [8, 256], strides = [1, 1]} : vector<8x2048xf32> to vector<8x256xf32>
    %50 = arith.addf %48, %49 : vector<8x256xf32>
    %51 = vector.broadcast %32 : vector<8x1xf32> to vector<8x256xf32>
    %52 = arith.addf %50, %51 : vector<8x256xf32>
    %cst_11 = arith.constant 0.000000e+00 : f32
    %53 = vector.broadcast %cst_11 : f32 to vector<8x256xf32>
    %54 = arith.maximumf %52, %53 : vector<8x256xf32>
    %55 = arith.maximumf %47, %54 : vector<8x256xf32>
    %56 = vector.extract_strided_slice %30 {offsets = [0, 768], sizes = [8, 256], strides = [1, 1]} : vector<8x2048xf32> to vector<8x256xf32>
    %57 = vector.extract_strided_slice %31 {offsets = [0, 1024], sizes = [8, 256], strides = [1, 1]} : vector<8x2048xf32> to vector<8x256xf32>
    %58 = arith.addf %56, %57 : vector<8x256xf32>
    %59 = vector.broadcast %32 : vector<8x1xf32> to vector<8x256xf32>
    %60 = arith.addf %58, %59 : vector<8x256xf32>
    %cst_12 = arith.constant 0.000000e+00 : f32
    %61 = vector.broadcast %cst_12 : f32 to vector<8x256xf32>
    %62 = arith.maximumf %60, %61 : vector<8x256xf32>
    %63 = arith.maximumf %55, %62 : vector<8x256xf32>
    %64 = vector.extract_strided_slice %30 {offsets = [0, 1024], sizes = [8, 256], strides = [1, 1]} : vector<8x2048xf32> to vector<8x256xf32>
    %65 = vector.extract_strided_slice %31 {offsets = [0, 1280], sizes = [8, 256], strides = [1, 1]} : vector<8x2048xf32> to vector<8x256xf32>
    %66 = arith.addf %64, %65 : vector<8x256xf32>
    %67 = vector.broadcast %32 : vector<8x1xf32> to vector<8x256xf32>
    %68 = arith.addf %66, %67 : vector<8x256xf32>
    %cst_13 = arith.constant 0.000000e+00 : f32
    %69 = vector.broadcast %cst_13 : f32 to vector<8x256xf32>
    %70 = arith.maximumf %68, %69 : vector<8x256xf32>
    %71 = arith.maximumf %63, %70 : vector<8x256xf32>
    %72 = vector.extract_strided_slice %30 {offsets = [0, 1280], sizes = [8, 256], strides = [1, 1]} : vector<8x2048xf32> to vector<8x256xf32>
    %73 = vector.extract_strided_slice %31 {offsets = [0, 1536], sizes = [8, 256], strides = [1, 1]} : vector<8x2048xf32> to vector<8x256xf32>
    %74 = arith.addf %72, %73 : vector<8x256xf32>
    %75 = vector.broadcast %32 : vector<8x1xf32> to vector<8x256xf32>
    %76 = arith.addf %74, %75 : vector<8x256xf32>
    %cst_14 = arith.constant 0.000000e+00 : f32
    %77 = vector.broadcast %cst_14 : f32 to vector<8x256xf32>
    %78 = arith.maximumf %76, %77 : vector<8x256xf32>
    %79 = arith.maximumf %71, %78 : vector<8x256xf32>
    %80 = vector.extract_strided_slice %30 {offsets = [0, 1536], sizes = [8, 256], strides = [1, 1]} : vector<8x2048xf32> to vector<8x256xf32>
    %81 = vector.extract_strided_slice %31 {offsets = [0, 1792], sizes = [8, 256], strides = [1, 1]} : vector<8x2048xf32> to vector<8x256xf32>
    %82 = arith.addf %80, %81 : vector<8x256xf32>
    %83 = vector.broadcast %32 : vector<8x1xf32> to vector<8x256xf32>
    %84 = arith.addf %82, %83 : vector<8x256xf32>
    %cst_15 = arith.constant 0.000000e+00 : f32
    %85 = vector.broadcast %cst_15 : f32 to vector<8x256xf32>
    %86 = arith.maximumf %84, %85 : vector<8x256xf32>
    %87 = arith.maximumf %79, %86 : vector<8x256xf32>
    %88 = vector.extract_strided_slice %29 {offsets = [0, 0], sizes = [8, 128], strides = [1, 1]} : vector<8x256xf32> to vector<8x128xf32>
    %89 = vector.extract_strided_slice %87 {offsets = [0, 0], sizes = [8, 128], strides = [1, 1]} : vector<8x256xf32> to vector<8x128xf32>
    %90 = vector.extract_strided_slice %29 {offsets = [0, 128], sizes = [8, 128], strides = [1, 1]} : vector<8x256xf32> to vector<8x128xf32>
    %91 = vector.extract_strided_slice %87 {offsets = [0, 128], sizes = [8, 128], strides = [1, 1]} : vector<8x256xf32> to vector<8x128xf32>
    %92 = tpu.concatenate %88, %89, %90, %91 in 0 : vector<8x128xf32>, vector<8x128xf32>, vector<8x128xf32>, vector<8x128xf32> -> vector<32x128xf32>
    %c0_16 = arith.constant 0 : index
    %c0_17 = arith.constant 0 : index
    %93 = vector.load %arg5[%c0_16, %c0_17] : memref<2x32xf32, #tpu.memory_space<vmem>>, vector<2x32xf32>
    %cst_18 = arith.constant dense<0.000000e+00> : vector<2x128xf32>
    %94 = tpu.matmul %93, %92, %cst_18 {dimension_numbers = #tpu.dot_dimension_numbers<[1], [0], [0], [1], [0, 0, 1, 1], [], []>} : vector<2x32xf32>, vector<32x128xf32>, vector<2x128xf32> -> vector<2x128xf32>
    %c0_19 = arith.constant 0 : index
    %c0_20 = arith.constant 0 : index
    %95 = vector.load %arg6[%c0_19, %c0_20] : memref<2x1xf32, #tpu.memory_space<vmem>>, vector<2x1xf32>
    %96 = vector.broadcast %95 : vector<2x1xf32> to vector<2x128xf32>
    %97 = arith.addf %94, %96 : vector<2x128xf32>
    %cst_21 = arith.constant dense<0xFF800000> : vector<128xf32>
    %98 = vector.multi_reduction <maximumf>, %97, %cst_21 [0] : vector<2x128xf32> to vector<128xf32>
    %99 = vector.shape_cast %98 : vector<128xf32> to vector<1x128xf32>
    %100 = vector.broadcast %99 : vector<1x128xf32> to vector<2x128xf32>
    %101 = arith.subf %97, %100 : vector<2x128xf32>
    %102 = math.exp %101 : vector<2x128xf32>
    %cst_22 = arith.constant dense<0.000000e+00> : vector<128xf32>
    %103 = vector.multi_reduction <add>, %102, %cst_22 [0] : vector<2x128xf32> to vector<128xf32>
    %104 = vector.shape_cast %103 : vector<128xf32> to vector<1x128xf32>
    %105 = math.log %104 : vector<1x128xf32>
    %106 = arith.addf %99, %105 : vector<1x128xf32>
    %107 = vector.broadcast %106 : vector<1x128xf32> to vector<2x128xf32>
    %108 = arith.subf %97, %107 : vector<2x128xf32>
    %c0_23 = arith.constant 0 : index
    %c0_24 = arith.constant 0 : index
    %109 = vector.load %arg7[%c0_23, %c0_24] : memref<2x128xf32, #tpu.memory_space<vmem>>, vector<2x128xf32>
    tpu.vector_store %arg7[%c0_23, %c0_24], %108 {strides = array<i32>} : memref<2x128xf32, #tpu.memory_space<vmem>>, vector<2x128xf32>,
    return
  }
  func.func @transform_0(%arg0: i32) -> (i32, i32, i32) {
    %c0_i32 = arith.constant 0 : i32
    %c0_i32_0 = arith.constant 0 : i32
    %c0_i32_1 = arith.constant 0 : i32
    return %arg0, %c0_i32, %c0_i32_0 : i32, i32, i32
  }
  func.func @transform_1(%arg0: i32) -> (i32, i32) {
    %c0_i32 = arith.constant 0 : i32
    %c0_i32_0 = arith.constant 0 : i32
    %c0_i32_1 = arith.constant 0 : i32
    return %c0_i32, %c0_i32_0 : i32, i32
  }
  func.func @transform_2(%arg0: i32) -> (i32, i32) {
    %c0_i32 = arith.constant 0 : i32
    %c0_i32_0 = arith.constant 0 : i32
    %c0_i32_1 = arith.constant 0 : i32
    return %c0_i32, %c0_i32_0 : i32, i32
  }
  func.func @transform_3(%arg0: i32) -> (i32, i32) {
    %c0_i32 = arith.constant 0 : i32
    %c0_i32_0 = arith.constant 0 : i32
    %c0_i32_1 = arith.constant 0 : i32
    return %c0_i32, %c0_i32_0 : i32, i32
  }
  func.func @transform_4(%arg0: i32) -> (i32, i32) {
    %c0_i32 = arith.constant 0 : i32
    %c0_i32_0 = arith.constant 0 : i32
    %c0_i32_1 = arith.constant 0 : i32
    return %c0_i32, %c0_i32_0 : i32, i32
  }
  func.func @transform_5(%arg0: i32) -> (i32, i32) {
    %c0_i32 = arith.constant 0 : i32
    %c0_i32_0 = arith.constant 0 : i32
    %c0_i32_1 = arith.constant 0 : i32
    return %c0_i32, %c0_i32_0 : i32, i32
  }
  func.func @transform_6(%arg0: i32) -> (i32, i32) {
    %c0_i32 = arith.constant 0 : i32
    %c0_i32_0 = arith.constant 0 : i32
    return %c0_i32, %arg0 : i32, i32
  }
}

</mosaic_0001>

<llo_original>
// kernel: tpu_custom_call.1
$region0: #{tpu_custom_call.1}
  #allocation0 [shape = 'u32[]', space=smem, size = 0x4, offset = 0x4, fixed_abs, tag = 'smem constant byte address 0x4 - core index']
  #allocation1 [shape = 'u32[144,128]{1,0:T(1,128)}', space=vmem, size = 0x12000, scoped, tag = 'internal scratch']
  %s0 = inlined_call_operand.hbm [shape: s32[1,1,2048], index: 0, kind: input, shape index: {}]
  %s1 = inlined_call_operand.vmem [shape: f32[24,32], index: 1, kind: input, shape index: {}]
  %s2 = inlined_call_operand.vmem [shape: f32[8,1], index: 2, kind: input, shape index: {}]
  %s3 = inlined_call_operand.vmem [shape: f32[8,1], index: 3, kind: input, shape index: {}]
  %s4 = inlined_call_operand.vmem [shape: f32[2,32], index: 4, kind: input, shape index: {}]
  %s5 = inlined_call_operand.vmem [shape: f32[2,1], index: 5, kind: input, shape index: {}]
  %s6 = inlined_call_operand.hbm [shape: f32[2,128], index: 6, kind: output, shape index: {}]
  %s7 = sld [smem:[#allocation0]]
  $region38: #{tpu_custom_call.1} parent=0
    _
  %s9 = ssub.s32 1, %s7
  %s10 = scalar_select 0, %s9, %s7
  $region1: #{tpu_custom_call.1} parent=0
    #allocation2 [shape = 'u8[8192]{0}', space=vmem, size = 0x2000, scoped, tag = 'input window, operand 0, single buffered']
    #allocation3 [shape = 's32[1]{0}', space=sflag, size = 0x4, scoped, tag = 'scoped memory for tpu_custom_call.1']
    #allocation4 [shape = 's32[1]{0}', space=sflag, size = 0x4, scoped, tag = 'scoped memory for tpu_custom_call.1']
    #allocation5 [shape = 'u8[1024]{0}', space=vmem, size = 0x400, scoped, tag = 'output window, operand 0, single buffered']
    %11 = vsyncpa [#allocation3], 0
    %12 = vsyncpa [#allocation4], 0
    // Predicated region
    $region2: #{tpu_custom_call.1} parent=1 // pred_check
      _
    $region3: #{tpu_custom_call.1} parent=1 // pred_check_branch
      %14 = sbr.rel (0) target = $region5
    $region4: #{tpu_custom_call.1} parent=1 // pred_region
      %s16 = ssub.s32 256, 256
      %17 = vsyncadd [#allocation3], %s16
      %s19 = sshll.u32 [#allocation2], 4
      %s20 = int_to_ptr.vmem [resolvable:$true] %s19
      %22 = dma.hbm_to_vmem [thread:$0]  %s0, 256, %s20, [#allocation3]
    $region5: #{tpu_custom_call.1} parent=1 // pred_fallthru
      _
    // Predicated region
    $region6: #{tpu_custom_call.1} parent=1 // pred_check
      _
    $region7: #{tpu_custom_call.1} parent=1 // pred_check_branch
      %24 = sbr.rel (0) target = $region9
    $region8: #{tpu_custom_call.1} parent=1 // pred_region
      _
    $region9: #{tpu_custom_call.1} parent=1 // pred_fallthru
      _
    // Predicated region
    $region10: #{tpu_custom_call.1} parent=1 // pred_check
      _
    $region11: #{tpu_custom_call.1} parent=1 // pred_check_branch
      %26 = sbr.rel (0) target = $region13
    $region12: #{tpu_custom_call.1} parent=1 // pred_region
      _
    $region13: #{tpu_custom_call.1} parent=1 // pred_fallthru
      _
    // Predicated region
    $region14: #{tpu_custom_call.1} parent=1 // pred_check
      _
    $region15: #{tpu_custom_call.1} parent=1 // pred_check_branch
      %28 = sbr.rel (0) target = $region17
    $region16: #{tpu_custom_call.1} parent=1 // pred_region
      _
    $region17: #{tpu_custom_call.1} parent=1 // pred_fallthru
      _
    // Predicated region
    $region18: #{tpu_custom_call.1} parent=1 // pred_check
      _
    $region19: #{tpu_custom_call.1} parent=1 // pred_check_branch
      %30 = sbr.rel (0) target = $region21
    $region20: #{tpu_custom_call.1} parent=1 // pred_region
      _
    $region21: #{tpu_custom_call.1} parent=1 // pred_fallthru
      _
    // Predicated region
    $region22: #{tpu_custom_call.1} parent=1 // pred_check
      _
    $region23: #{tpu_custom_call.1} parent=1 // pred_check_branch
      %32 = sbr.rel (0) target = $region25
    $region24: #{tpu_custom_call.1} parent=1 // pred_region
      _
    $region25: #{tpu_custom_call.1} parent=1 // pred_fallthru
      _
    // Predicated region
    $region26: #{tpu_custom_call.1} parent=1 // pred_check
      _
    $region27: #{tpu_custom_call.1} parent=1 // pred_check_branch
      %34 = sbr.rel (0) target = $region29
    $region28: #{tpu_custom_call.1} parent=1 // pred_region
      %35 = dma.done [#allocation3], 256
    $region29: #{tpu_custom_call.1} parent=1 // pred_fallthru
      _
    %v36 = vld [vmem:[#allocation2] sm:$0xff]
    %v37 = vld [vmem:[#allocation2 + $0x8] sm:$0xff]
    %v38 = vlaneseq
    %v39 = vshrl.u32 %v38, 7
    %v40 = vadd.s32 %v39, 8
    %v41 = vadd.s32 %v39, 16
    %v42 = vadd.s32 %v39, 24
    %v43 = vlaneseq
    %v44 = vshrl.u32 %v43, 7
    %v45 = vsub.s32 0, %v44
    %v46 = vrot.slane %v36, %v45
    %v47 = vlaneseq
    %v48 = vshrl.u32 %v47, 7
    %v49 = vsub.s32 1, %v48
    %v50 = vrot.slane %v36, %v49
    %v51 = vlaneseq
    %v52 = vshrl.u32 %v51, 7
    %v53 = vsub.s32 2, %v52
    %v54 = vrot.slane %v36, %v53
    %v55 = vlaneseq
    %v56 = vshrl.u32 %v55, 7
    %v57 = vsub.s32 3, %v56
    %v58 = vrot.slane %v36, %v57
    %v59 = vlaneseq
    %v60 = vshrl.u32 %v59, 7
    %v61 = vsub.s32 4, %v60
    %v62 = vrot.slane %v36, %v61
    %v63 = vlaneseq
    %v64 = vshrl.u32 %v63, 7
    %v65 = vsub.s32 5, %v64
    %v66 = vrot.slane %v36, %v65
    %v67 = vlaneseq
    %v68 = vshrl.u32 %v67, 7
    %v69 = vsub.s32 6, %v68
    %v70 = vrot.slane %v36, %v69
    %v71 = vlaneseq
    %v72 = vshrl.u32 %v71, 7
    %v73 = vsub.s32 7, %v72
    %v74 = vrot.slane %v36, %v73
    %v75 = vlaneseq
    %v76 = vshrl.u32 %v75, 7
    %v77 = vsub.s32 0, %v76
    %v78 = vrot.slane %v37, %v77
    %v79 = vlaneseq
    %v80 = vshrl.u32 %v79, 7
    %v81 = vsub.s32 1, %v80
    %v82 = vrot.slane %v37, %v81
    %v83 = vlaneseq
    %v84 = vshrl.u32 %v83, 7
    %v85 = vsub.s32 2, %v84
    %v86 = vrot.slane %v37, %v85
    %v87 = vlaneseq
    %v88 = vshrl.u32 %v87, 7
    %v89 = vsub.s32 3, %v88
    %v90 = vrot.slane %v37, %v89
    %v91 = vlaneseq
    %v92 = vshrl.u32 %v91, 7
    %v93 = vsub.s32 4, %v92
    %v94 = vrot.slane %v37, %v93
    %v95 = vlaneseq
    %v96 = vshrl.u32 %v95, 7
    %v97 = vsub.s32 5, %v96
    %v98 = vrot.slane %v37, %v97
    %v99 = vlaneseq
    %v100 = vshrl.u32 %v99, 7
    %v101 = vsub.s32 6, %v100
    %v102 = vrot.slane %v37, %v101
    %v103 = vlaneseq
    %v104 = vshrl.u32 %v103, 7
    %v105 = vsub.s32 7, %v104
    %v106 = vrot.slane %v37, %v105
    %vm107 = vcmp.eq.s32.totalorder %v39, %v46
    %vm108 = vcmp.eq.s32.totalorder %v39, %v50
    %vm109 = vcmp.eq.s32.totalorder %v39, %v54
    %vm110 = vcmp.eq.s32.totalorder %v39, %v58
    %vm111 = vcmp.eq.s32.totalorder %v39, %v62
    %vm112 = vcmp.eq.s32.totalorder %v39, %v66
    %vm113 = vcmp.eq.s32.totalorder %v39, %v70
    %vm114 = vcmp.eq.s32.totalorder %v39, %v74
    %vm115 = vcmp.eq.s32.totalorder %v39, %v78
    %vm116 = vcmp.eq.s32.totalorder %v39, %v82
    %vm117 = vcmp.eq.s32.totalorder %v39, %v86
    %vm118 = vcmp.eq.s32.totalorder %v39, %v90
    %vm119 = vcmp.eq.s32.totalorder %v39, %v94
    %vm120 = vcmp.eq.s32.totalorder %v39, %v98
    %vm121 = vcmp.eq.s32.totalorder %v39, %v102
    %vm122 = vcmp.eq.s32.totalorder %v39, %v106
    %vm123 = vcmp.eq.s32.totalorder %v40, %v46
    %vm124 = vcmp.eq.s32.totalorder %v40, %v50
    %vm125 = vcmp.eq.s32.totalorder %v40, %v54
    %vm126 = vcmp.eq.s32.totalorder %v40, %v58
    %vm127 = vcmp.eq.s32.totalorder %v40, %v62
    %vm128 = vcmp.eq.s32.totalorder %v40, %v66
    %vm129 = vcmp.eq.s32.totalorder %v40, %v70
    %vm130 = vcmp.eq.s32.totalorder %v40, %v74
    %vm131 = vcmp.eq.s32.totalorder %v40, %v78
    %vm132 = vcmp.eq.s32.totalorder %v40, %v82
    %vm133 = vcmp.eq.s32.totalorder %v40, %v86
    %vm134 = vcmp.eq.s32.totalorder %v40, %v90
    %vm135 = vcmp.eq.s32.totalorder %v40, %v94
    %vm136 = vcmp.eq.s32.totalorder %v40, %v98
    %vm137 = vcmp.eq.s32.totalorder %v40, %v102
    %vm138 = vcmp.eq.s32.totalorder %v40, %v106
    %vm139 = vcmp.eq.s32.totalorder %v41, %v46
    %vm140 = vcmp.eq.s32.totalorder %v41, %v50
    %vm141 = vcmp.eq.s32.totalorder %v41, %v54
    %vm142 = vcmp.eq.s32.totalorder %v41, %v58
    %vm143 = vcmp.eq.s32.totalorder %v41, %v62
    %vm144 = vcmp.eq.s32.totalorder %v41, %v66
    %vm145 = vcmp.eq.s32.totalorder %v41, %v70
    %vm146 = vcmp.eq.s32.totalorder %v41, %v74
    %vm147 = vcmp.eq.s32.totalorder %v41, %v78
    %vm148 = vcmp.eq.s32.totalorder %v41, %v82
    %vm149 = vcmp.eq.s32.totalorder %v41, %v86
    %vm150 = vcmp.eq.s32.totalorder %v41, %v90
    %vm151 = vcmp.eq.s32.totalorder %v41, %v94
    %vm152 = vcmp.eq.s32.totalorder %v41, %v98
    %vm153 = vcmp.eq.s32.totalorder %v41, %v102
    %vm154 = vcmp.eq.s32.totalorder %v41, %v106
    %vm155 = vcmp.eq.s32.totalorder %v42, %v46
    %vm156 = vcmp.eq.s32.totalorder %v42, %v50
    %vm157 = vcmp.eq.s32.totalorder %v42, %v54
    %vm158 = vcmp.eq.s32.totalorder %v42, %v58
    %vm159 = vcmp.eq.s32.totalorder %v42, %v62
    %vm160 = vcmp.eq.s32.totalorder %v42, %v66
    %vm161 = vcmp.eq.s32.totalorder %v42, %v70
    %vm162 = vcmp.eq.s32.totalorder %v42, %v74
    %vm163 = vcmp.eq.s32.totalorder %v42, %v78
    %vm164 = vcmp.eq.s32.totalorder %v42, %v82
    %vm165 = vcmp.eq.s32.totalorder %v42, %v86
    %vm166 = vcmp.eq.s32.totalorder %v42, %v90
    %vm167 = vcmp.eq.s32.totalorder %v42, %v94
    %vm168 = vcmp.eq.s32.totalorder %v42, %v98
    %vm169 = vcmp.eq.s32.totalorder %v42, %v102
    %vm170 = vcmp.eq.s32.totalorder %v42, %v106
    %v171 = vsel %vm107, 1, 0
    %v172 = vsel %vm108, 1, 0
    %v173 = vsel %vm109, 1, 0
    %v174 = vsel %vm110, 1, 0
    %v175 = vsel %vm111, 1, 0
    %v176 = vsel %vm112, 1, 0
    %v177 = vsel %vm113, 1, 0
    %v178 = vsel %vm114, 1, 0
    %v179 = vsel %vm115, 1, 0
    %v180 = vsel %vm116, 1, 0
    %v181 = vsel %vm117, 1, 0
    %v182 = vsel %vm118, 1, 0
    %v183 = vsel %vm119, 1, 0
    %v184 = vsel %vm120, 1, 0
    %v185 = vsel %vm121, 1, 0
    %v186 = vsel %vm122, 1, 0
    %v187 = vsel %vm123, 1, 0
    %v188 = vsel %vm124, 1, 0
    %v189 = vsel %vm125, 1, 0
    %v190 = vsel %vm126, 1, 0
    %v191 = vsel %vm127, 1, 0
    %v192 = vsel %vm128, 1, 0
    %v193 = vsel %vm129, 1, 0
    %v194 = vsel %vm130, 1, 0
    %v195 = vsel %vm131, 1, 0
    %v196 = vsel %vm132, 1, 0
    %v197 = vsel %vm133, 1, 0
    %v198 = vsel %vm134, 1, 0
    %v199 = vsel %vm135, 1, 0
    %v200 = vsel %vm136, 1, 0
    %v201 = vsel %vm137, 1, 0
    %v202 = vsel %vm138, 1, 0
    %v203 = vsel %vm139, 1, 0
    %v204 = vsel %vm140, 1, 0
    %v205 = vsel %vm141, 1, 0
    %v206 = vsel %vm142, 1, 0
    %v207 = vsel %vm143, 1, 0
    %v208 = vsel %vm144, 1, 0
    %v209 = vsel %vm145, 1, 0
    %v210 = vsel %vm146, 1, 0
    %v211 = vsel %vm147, 1, 0
    %v212 = vsel %vm148, 1, 0
    %v213 = vsel %vm149, 1, 0
    %v214 = vsel %vm150, 1, 0
    %v215 = vsel %vm151, 1, 0
    %v216 = vsel %vm152, 1, 0
    %v217 = vsel %vm153, 1, 0
    %v218 = vsel %vm154, 1, 0
    %v219 = vsel %vm155, 1, 0
    %v220 = vsel %vm156, 1, 0
    %v221 = vsel %vm157, 1, 0
    %v222 = vsel %vm158, 1, 0
    %v223 = vsel %vm159, 1, 0
    %v224 = vsel %vm160, 1, 0
    %v225 = vsel %vm161, 1, 0
    %v226 = vsel %vm162, 1, 0
    %v227 = vsel %vm163, 1, 0
    %v228 = vsel %vm164, 1, 0
    %v229 = vsel %vm165, 1, 0
    %v230 = vsel %vm166, 1, 0
    %v231 = vsel %vm167, 1, 0
    %v232 = vsel %vm168, 1, 0
    %v233 = vsel %vm169, 1, 0
    %v234 = vsel %vm170, 1, 0
    %v235 = vcvt.s32.f32 %v171
    %v236 = vcvt.s32.f32 %v172
    %v237 = vcvt.s32.f32 %v173
    %v238 = vcvt.s32.f32 %v174
    %v239 = vcvt.s32.f32 %v175
    %v240 = vcvt.s32.f32 %v176
    %v241 = vcvt.s32.f32 %v177
    %v242 = vcvt.s32.f32 %v178
    %v243 = vcvt.s32.f32 %v179
    %v244 = vcvt.s32.f32 %v180
    %v245 = vcvt.s32.f32 %v181
    %v246 = vcvt.s32.f32 %v182
    %v247 = vcvt.s32.f32 %v183
    %v248 = vcvt.s32.f32 %v184
    %v249 = vcvt.s32.f32 %v185
    %v250 = vcvt.s32.f32 %v186
    %v251 = vcvt.s32.f32 %v187
    %v252 = vcvt.s32.f32 %v188
    %v253 = vcvt.s32.f32 %v189
    %v254 = vcvt.s32.f32 %v190
    %v255 = vcvt.s32.f32 %v191
    %v256 = vcvt.s32.f32 %v192
    %v257 = vcvt.s32.f32 %v193
    %v258 = vcvt.s32.f32 %v194
    %v259 = vcvt.s32.f32 %v195
    %v260 = vcvt.s32.f32 %v196
    %v261 = vcvt.s32.f32 %v197
    %v262 = vcvt.s32.f32 %v198
    %v263 = vcvt.s32.f32 %v199
    %v264 = vcvt.s32.f32 %v200
    %v265 = vcvt.s32.f32 %v201
    %v266 = vcvt.s32.f32 %v202
    %v267 = vcvt.s32.f32 %v203
    %v268 = vcvt.s32.f32 %v204
    %v269 = vcvt.s32.f32 %v205
    %v270 = vcvt.s32.f32 %v206
    %v271 = vcvt.s32.f32 %v207
    %v272 = vcvt.s32.f32 %v208
    %v273 = vcvt.s32.f32 %v209
    %v274 = vcvt.s32.f32 %v210
    %v275 = vcvt.s32.f32 %v211
    %v276 = vcvt.s32.f32 %v212
    %v277 = vcvt.s32.f32 %v213
    %v278 = vcvt.s32.f32 %v214
    %v279 = vcvt.s32.f32 %v215
    %v280 = vcvt.s32.f32 %v216
    %v281 = vcvt.s32.f32 %v217
    %v282 = vcvt.s32.f32 %v218
    %v283 = vcvt.s32.f32 %v219
    %v284 = vcvt.s32.f32 %v220
    %v285 = vcvt.s32.f32 %v221
    %v286 = vcvt.s32.f32 %v222
    %v287 = vcvt.s32.f32 %v223
    %v288 = vcvt.s32.f32 %v224
    %v289 = vcvt.s32.f32 %v225
    %v290 = vcvt.s32.f32 %v226
    %v291 = vcvt.s32.f32 %v227
    %v292 = vcvt.s32.f32 %v228
    %v293 = vcvt.s32.f32 %v229
    %v294 = vcvt.s32.f32 %v230
    %v295 = vcvt.s32.f32 %v231
    %v296 = vcvt.s32.f32 %v232
    %v297 = vcvt.s32.f32 %v233
    %v298 = vcvt.s32.f32 %v234
    %v299 = vld [vmem:[%s1] sm:$0xff]
    %v300 = vld [vmem:[%s1 + $0x8] sm:$0xff]
    %v301 = vld [vmem:[%s1 + $0x10] sm:$0xff]
    %vm302 = vcmask 261120
    %v304 = vsel %vm302, %v299, 0
    %v307 = vsel %vm302, %v300, 0
    %v310 = vsel %vm302, %v301, 0
    %312 = vmatprep.subr.mxu0 %v236
    %313 = vmatpush1.msra.mxu0 %v235
    %314 = vmatprep.subr.mxu0 %v252
    %315 = vmatpush1.msra.mxu0 %v251
    %316 = vmatprep.subr.mxu0 %v268
    %317 = vmatpush1.msra.mxu0 %v267
    %318 = vmatprep.subr.mxu0 %v284
    %319 = vmatpush1.msra.mxu0 %v283
    %320 = vmatprep.subr.mxu0 0.0
    %321 = vmatpush1.msra.mxu0 0.0
    %322 = vmatprep.subr.mxu0 0.0
    %323 = vmatpush1.msra.mxu0 0.0
    %324 = vmatprep.subr.mxu0 0.0
    %325 = vmatpush1.msra.mxu0 0.0
    %326 = vmatprep.subr.mxu0 0.0
    %327 = vmatpush1.msra.mxu0 0.0
    %328 = vmatprep.subr.mxu0 0.0
    %329 = vmatpush1.msra.mxu0 0.0
    %330 = vmatprep.subr.mxu0 0.0
    %331 = vmatpush1.msra.mxu0 0.0
    %332 = vmatprep.subr.mxu0 0.0
    %333 = vmatpush1.msra.mxu0 0.0
    %334 = vmatprep.subr.mxu0 0.0
    %335 = vmatpush1.msra.mxu0 0.0
    %336 = vmatprep.subr.mxu0 0.0
    %337 = vmatpush1.msra.mxu0 0.0
    %338 = vmatprep.subr.mxu0 0.0
    %339 = vmatpush1.msra.mxu0 0.0
    %340 = vmatprep.subr.mxu0 0.0
    %341 = vmatpush1.msra.mxu0 0.0
    %342 = vmatprep.subr.mxu0 0.0
    %343 = vmatpush1.msra.mxu0 0.0
    %344 = vmatprep.subr.mxu0 0.0
    %345 = vmatpush1.msra.mxu0 0.0
    %346 = vmatprep.subr.mxu0 0.0
    %347 = vmatpush1.msra.mxu0 0.0
    %348 = vmatprep.subr.mxu0 0.0
    %349 = vmatpush1.msra.mxu0 0.0
    %350 = vmatprep.subr.mxu0 0.0
    %351 = vmatpush1.msra.mxu0 0.0
    %352 = vmatprep.subr.mxu0 0.0
    %353 = vmatpush1.msra.mxu0 0.0
    %354 = vmatprep.subr.mxu0 0.0
    %355 = vmatpush1.msra.mxu0 0.0
    %356 = vmatprep.subr.mxu0 0.0
    %357 = vmatpush1.msra.mxu0 0.0
    %358 = vmatprep.subr.mxu0 0.0
    %359 = vmatpush1.msra.mxu0 0.0
    %360 = vmatprep.subr.mxu0 0.0
    %361 = vmatpush1.msra.mxu0 0.0
    %362 = vmatprep.subr.mxu0 0.0
    %363 = vmatpush1.msra.mxu0 0.0
    %364 = vmatprep.subr.mxu0 0.0
    %365 = vmatpush1.msra.mxu0 0.0
    %366 = vmatprep.subr.mxu0 0.0
    %367 = vmatpush1.msra.mxu0 0.0
    %368 = vmatprep.subr.mxu0 0.0
    %369 = vmatpush1.msra.mxu0 0.0
    %370 = vmatprep.subr.mxu0 0.0
    %371 = vmatpush1.msra.mxu0 0.0
    %372 = vmatprep.subr.mxu0 0.0
    %373 = vmatpush1.msra.mxu0 0.0
    %374 = vmatprep.subr.mxu0 0.0
    %375 = vmatpush1.msra.mxu0 0.0
    %376 = vmatprep.mubr.f32.mxu0 0.0
    %377 = vmatmul.mubr.f32.gmra.mrb[0].mxu0 %v304
    %v378 = vpop.f32.mrb[0].mxu0
    %v379 = vadd.f32 0.0, %v378
    %v380 = vpop.f32.mrb[0].mxu0
    %v381 = vadd.f32 0.0, %v380
    %382 = vmatprep.mubr.f32.mxu0 0.0
    %383 = vmatmul.mubr.f32.gmra.mrb[0].mxu0 %v307
    %v384 = vpop.f32.mrb[0].mxu0
    %v385 = vadd.f32 0.0, %v384
    %v386 = vpop.f32.mrb[0].mxu0
    %v387 = vadd.f32 0.0, %v386
    %388 = vmatprep.mubr.f32.mxu0 0.0
    %389 = vmatmul.mubr.f32.gmra.mrb[0].mxu0 %v310
    %v390 = vpop.f32.mrb[0].mxu0
    %v391 = vpop.f32.mrb[0].mxu0
    %392 = vdwg.mxu0
    %393 = vmatprep.subr.mxu0 %v238
    %394 = vmatpush1.msra.mxu0 %v237
    %395 = vmatprep.subr.mxu0 %v254
    %396 = vmatpush1.msra.mxu0 %v253
    %397 = vmatprep.subr.mxu0 %v270
    %398 = vmatpush1.msra.mxu0 %v269
    %399 = vmatprep.subr.mxu0 %v286
    %400 = vmatpush1.msra.mxu0 %v285
    %401 = vmatprep.subr.mxu0 0.0
    %402 = vmatpush1.msra.mxu0 0.0
    %403 = vmatprep.subr.mxu0 0.0
    %404 = vmatpush1.msra.mxu0 0.0
    %405 = vmatprep.subr.mxu0 0.0
    %406 = vmatpush1.msra.mxu0 0.0
    %407 = vmatprep.subr.mxu0 0.0
    %408 = vmatpush1.msra.mxu0 0.0
    %409 = vmatprep.subr.mxu0 0.0
    %410 = vmatpush1.msra.mxu0 0.0
    %411 = vmatprep.subr.mxu0 0.0
    %412 = vmatpush1.msra.mxu0 0.0
    %413 = vmatprep.subr.mxu0 0.0
    %414 = vmatpush1.msra.mxu0 0.0
    %415 = vmatprep.subr.mxu0 0.0
    %416 = vmatpush1.msra.mxu0 0.0
    %417 = vmatprep.subr.mxu0 0.0
    %418 = vmatpush1.msra.mxu0 0.0
    %419 = vmatprep.subr.mxu0 0.0
    %420 = vmatpush1.msra.mxu0 0.0
    %421 = vmatprep.subr.mxu0 0.0
    %422 = vmatpush1.msra.mxu0 0.0
    %423 = vmatprep.subr.mxu0 0.0
    %424 = vmatpush1.msra.mxu0 0.0
    %425 = vmatprep.subr.mxu0 0.0
    %426 = vmatpush1.msra.mxu0 0.0
    %427 = vmatprep.subr.mxu0 0.0
    %428 = vmatpush1.msra.mxu0 0.0
    %429 = vmatprep.subr.mxu0 0.0
    %430 = vmatpush1.msra.mxu0 0.0
    %431 = vmatprep.subr.mxu0 0.0
    %432 = vmatpush1.msra.mxu0 0.0
    %433 = vmatprep.subr.mxu0 0.0
    %434 = vmatpush1.msra.mxu0 0.0
    %435 = vmatprep.subr.mxu0 0.0
    %436 = vmatpush1.msra.mxu0 0.0
    %437 = vmatprep.subr.mxu0 0.0
    %438 = vmatpush1.msra.mxu0 0.0
    %439 = vmatprep.subr.mxu0 0.0
    %440 = vmatpush1.msra.mxu0 0.0
    %441 = vmatprep.subr.mxu0 0.0
    %442 = vmatpush1.msra.mxu0 0.0
    %443 = vmatprep.subr.mxu0 0.0
    %444 = vmatpush1.msra.mxu0 0.0
    %445 = vmatprep.subr.mxu0 0.0
    %446 = vmatpush1.msra.mxu0 0.0
    %447 = vmatprep.subr.mxu0 0.0
    %448 = vmatpush1.msra.mxu0 0.0
    %449 = vmatprep.subr.mxu0 0.0
    %450 = vmatpush1.msra.mxu0 0.0
    %451 = vmatprep.subr.mxu0 0.0
    %452 = vmatpush1.msra.mxu0 0.0
    %453 = vmatprep.subr.mxu0 0.0
    %454 = vmatpush1.msra.mxu0 0.0
    %455 = vmatprep.subr.mxu0 0.0
    %456 = vmatpush1.msra.mxu0 0.0
    %457 = vmatprep.mubr.f32.mxu0 0.0
    %458 = vmatmul.mubr.f32.gmra.mrb[0].mxu0 %v304
    %v459 = vpop.f32.mrb[0].mxu0
    %v460 = vadd.f32 0.0, %v459
    %v461 = vpop.f32.mrb[0].mxu0
    %v462 = vadd.f32 0.0, %v461
    %463 = vmatprep.mubr.f32.mxu0 0.0
    %464 = vmatmul.mubr.f32.gmra.mrb[0].mxu0 %v307
    %v465 = vpop.f32.mrb[0].mxu0
    %v466 = vadd.f32 0.0, %v465
    %v467 = vpop.f32.mrb[0].mxu0
    %v468 = vadd.f32 0.0, %v467
    %469 = vmatprep.mubr.f32.mxu0 0.0
    %470 = vmatmul.mubr.f32.gmra.mrb[0].mxu0 %v310
    %v471 = vpop.f32.mrb[0].mxu0
    %v472 = vadd.f32 0.0, %v471
    %v473 = vpop.f32.mrb[0].mxu0
    %v474 = vadd.f32 0.0, %v473
    %475 = vdwg.mxu0
    %476 = vmatprep.subr.mxu0 %v240
    %477 = vmatpush1.msra.mxu0 %v239
    %478 = vmatprep.subr.mxu0 %v256
    %479 = vmatpush1.msra.mxu0 %v255
    %480 = vmatprep.subr.mxu0 %v272
    %481 = vmatpush1.msra.mxu0 %v271
    %482 = vmatprep.subr.mxu0 %v288
    %483 = vmatpush1.msra.mxu0 %v287
    %484 = vmatprep.subr.mxu0 0.0
    %485 = vmatpush1.msra.mxu0 0.0
    %486 = vmatprep.subr.mxu0 0.0
    %487 = vmatpush1.msra.mxu0 0.0
    %488 = vmatprep.subr.mxu0 0.0
    %489 = vmatpush1.msra.mxu0 0.0
    %490 = vmatprep.subr.mxu0 0.0
    %491 = vmatpush1.msra.mxu0 0.0
    %492 = vmatprep.subr.mxu0 0.0
    %493 = vmatpush1.msra.mxu0 0.0
    %494 = vmatprep.subr.mxu0 0.0
    %495 = vmatpush1.msra.mxu0 0.0
    %496 = vmatprep.subr.mxu0 0.0
    %497 = vmatpush1.msra.mxu0 0.0
    %498 = vmatprep.subr.mxu0 0.0
    %499 = vmatpush1.msra.mxu0 0.0
    %500 = vmatprep.subr.mxu0 0.0
    %501 = vmatpush1.msra.mxu0 0.0
    %502 = vmatprep.subr.mxu0 0.0
    %503 = vmatpush1.msra.mxu0 0.0
    %504 = vmatprep.subr.mxu0 0.0
    %505 = vmatpush1.msra.mxu0 0.0
    %506 = vmatprep.subr.mxu0 0.0
    %507 = vmatpush1.msra.mxu0 0.0
    %508 = vmatprep.subr.mxu0 0.0
    %509 = vmatpush1.msra.mxu0 0.0
    %510 = vmatprep.subr.mxu0 0.0
    %511 = vmatpush1.msra.mxu0 0.0
    %512 = vmatprep.subr.mxu0 0.0
    %513 = vmatpush1.msra.mxu0 0.0
    %514 = vmatprep.subr.mxu0 0.0
    %515 = vmatpush1.msra.mxu0 0.0
    %516 = vmatprep.subr.mxu0 0.0
    %517 = vmatpush1.msra.mxu0 0.0
    %518 = vmatprep.subr.mxu0 0.0
    %519 = vmatpush1.msra.mxu0 0.0
    %520 = vmatprep.subr.mxu0 0.0
    %521 = vmatpush1.msra.mxu0 0.0
    %522 = vmatprep.subr.mxu0 0.0
    %523 = vmatpush1.msra.mxu0 0.0
    %524 = vmatprep.subr.mxu0 0.0
    %525 = vmatpush1.msra.mxu0 0.0
    %526 = vmatprep.subr.mxu0 0.0
    %527 = vmatpush1.msra.mxu0 0.0
    %528 = vmatprep.subr.mxu0 0.0
    %529 = vmatpush1.msra.mxu0 0.0
    %530 = vmatprep.subr.mxu0 0.0
    %531 = vmatpush1.msra.mxu0 0.0
    %532 = vmatprep.subr.mxu0 0.0
    %533 = vmatpush1.msra.mxu0 0.0
    %534 = vmatprep.subr.mxu0 0.0
    %535 = vmatpush1.msra.mxu0 0.0
    %536 = vmatprep.subr.mxu0 0.0
    %537 = vmatpush1.msra.mxu0 0.0
    %538 = vmatprep.subr.mxu0 0.0
    %539 = vmatpush1.msra.mxu0 0.0
    %540 = vmatprep.mubr.f32.mxu0 0.0
    %541 = vmatmul.mubr.f32.gmra.mrb[0].mxu0 %v304
    %v542 = vpop.f32.mrb[0].mxu0
    %v543 = vadd.f32 0.0, %v542
    %v544 = vpop.f32.mrb[0].mxu0
    %v545 = vadd.f32 0.0, %v544
    %546 = vmatprep.mubr.f32.mxu0 0.0
    %547 = vmatmul.mubr.f32.gmra.mrb[0].mxu0 %v307
    %v548 = vpop.f32.mrb[0].mxu0
    %v549 = vadd.f32 0.0, %v548
    %v550 = vpop.f32.mrb[0].mxu0
    %v551 = vadd.f32 0.0, %v550
    %552 = vmatprep.mubr.f32.mxu0 0.0
    %553 = vmatmul.mubr.f32.gmra.mrb[0].mxu0 %v310
    %v554 = vpop.f32.mrb[0].mxu0
    %v555 = vadd.f32 0.0, %v554
    %v556 = vpop.f32.mrb[0].mxu0
    %v557 = vadd.f32 0.0, %v556
    %558 = vdwg.mxu0
    %559 = vmatprep.subr.mxu0 %v242
    %560 = vmatpush1.msra.mxu0 %v241
    %561 = vmatprep.subr.mxu0 %v258
    %562 = vmatpush1.msra.mxu0 %v257
    %563 = vmatprep.subr.mxu0 %v274
    %564 = vmatpush1.msra.mxu0 %v273
    %565 = vmatprep.subr.mxu0 %v290
    %566 = vmatpush1.msra.mxu0 %v289
    %567 = vmatprep.subr.mxu0 0.0
    %568 = vmatpush1.msra.mxu0 0.0
    %569 = vmatprep.subr.mxu0 0.0
    %570 = vmatpush1.msra.mxu0 0.0
    %571 = vmatprep.subr.mxu0 0.0
    %572 = vmatpush1.msra.mxu0 0.0
    %573 = vmatprep.subr.mxu0 0.0
    %574 = vmatpush1.msra.mxu0 0.0
    %575 = vmatprep.subr.mxu0 0.0
    %576 = vmatpush1.msra.mxu0 0.0
    %577 = vmatprep.subr.mxu0 0.0
    %578 = vmatpush1.msra.mxu0 0.0
    %579 = vmatprep.subr.mxu0 0.0
    %580 = vmatpush1.msra.mxu0 0.0
    %581 = vmatprep.subr.mxu0 0.0
    %582 = vmatpush1.msra.mxu0 0.0
    %583 = vmatprep.subr.mxu0 0.0
    %584 = vmatpush1.msra.mxu0 0.0
    %585 = vmatprep.subr.mxu0 0.0
    %586 = vmatpush1.msra.mxu0 0.0
    %587 = vmatprep.subr.mxu0 0.0
    %588 = vmatpush1.msra.mxu0 0.0
    %589 = vmatprep.subr.mxu0 0.0
    %590 = vmatpush1.msra.mxu0 0.0
    %591 = vmatprep.subr.mxu0 0.0
    %592 = vmatpush1.msra.mxu0 0.0
    %593 = vmatprep.subr.mxu0 0.0
    %594 = vmatpush1.msra.mxu0 0.0
    %595 = vmatprep.subr.mxu0 0.0
    %596 = vmatpush1.msra.mxu0 0.0
    %597 = vmatprep.subr.mxu0 0.0
    %598 = vmatpush1.msra.mxu0 0.0
    %599 = vmatprep.subr.mxu0 0.0
    %600 = vmatpush1.msra.mxu0 0.0
    %601 = vmatprep.subr.mxu0 0.0
    %602 = vmatpush1.msra.mxu0 0.0
    %603 = vmatprep.subr.mxu0 0.0
    %604 = vmatpush1.msra.mxu0 0.0
    %605 = vmatprep.subr.mxu0 0.0
    %606 = vmatpush1.msra.mxu0 0.0
    %607 = vmatprep.subr.mxu0 0.0
    %608 = vmatpush1.msra.mxu0 0.0
    %609 = vmatprep.subr.mxu0 0.0
    %610 = vmatpush1.msra.mxu0 0.0
    %611 = vmatprep.subr.mxu0 0.0
    %612 = vmatpush1.msra.mxu0 0.0
    %613 = vmatprep.subr.mxu0 0.0
    %614 = vmatpush1.msra.mxu0 0.0
    %615 = vmatprep.subr.mxu0 0.0
    %616 = vmatpush1.msra.mxu0 0.0
    %617 = vmatprep.subr.mxu0 0.0
    %618 = vmatpush1.msra.mxu0 0.0
    %619 = vmatprep.subr.mxu0 0.0
    %620 = vmatpush1.msra.mxu0 0.0
    %621 = vmatprep.subr.mxu0 0.0
    %622 = vmatpush1.msra.mxu0 0.0
    %623 = vmatprep.mubr.f32.mxu0 0.0
    %624 = vmatmul.mubr.f32.gmra.mrb[0].mxu0 %v304
    %v625 = vpop.f32.mrb[0].mxu0
    %v626 = vadd.f32 0.0, %v625
    %v627 = vpop.f32.mrb[0].mxu0
    %v628 = vadd.f32 0.0, %v627
    %629 = vmatprep.mubr.f32.mxu0 0.0
    %630 = vmatmul.mubr.f32.gmra.mrb[0].mxu0 %v307
    %v631 = vpop.f32.mrb[0].mxu0
    %v632 = vadd.f32 0.0, %v631
    %v633 = vpop.f32.mrb[0].mxu0
    %v634 = vadd.f32 0.0, %v633
    %635 = vmatprep.mubr.f32.mxu0 0.0
    %636 = vmatmul.mubr.f32.gmra.mrb[0].mxu0 %v310
    %v637 = vpop.f32.mrb[0].mxu0
    %v638 = vadd.f32 0.0, %v637
    %v639 = vpop.f32.mrb[0].mxu0
    %v640 = vadd.f32 0.0, %v639
    %641 = vdwg.mxu0
    %642 = vmatprep.subr.mxu0 %v244
    %643 = vmatpush1.msra.mxu0 %v243
    %644 = vmatprep.subr.mxu0 %v260
    %645 = vmatpush1.msra.mxu0 %v259
    %646 = vmatprep.subr.mxu0 %v276
    %647 = vmatpush1.msra.mxu0 %v275
    %648 = vmatprep.subr.mxu0 %v292
    %649 = vmatpush1.msra.mxu0 %v291
    %650 = vmatprep.subr.mxu0 0.0
    %651 = vmatpush1.msra.mxu0 0.0
    %652 = vmatprep.subr.mxu0 0.0
    %653 = vmatpush1.msra.mxu0 0.0
    %654 = vmatprep.subr.mxu0 0.0
    %655 = vmatpush1.msra.mxu0 0.0
    %656 = vmatprep.subr.mxu0 0.0
    %657 = vmatpush1.msra.mxu0 0.0
    %658 = vmatprep.subr.mxu0 0.0
    %659 = vmatpush1.msra.mxu0 0.0
    %660 = vmatprep.subr.mxu0 0.0
    %661 = vmatpush1.msra.mxu0 0.0
    %662 = vmatprep.subr.mxu0 0.0
    %663 = vmatpush1.msra.mxu0 0.0
    %664 = vmatprep.subr.mxu0 0.0
    %665 = vmatpush1.msra.mxu0 0.0
    %666 = vmatprep.subr.mxu0 0.0
    %667 = vmatpush1.msra.mxu0 0.0
    %668 = vmatprep.subr.mxu0 0.0
    %669 = vmatpush1.msra.mxu0 0.0
    %670 = vmatprep.subr.mxu0 0.0
    %671 = vmatpush1.msra.mxu0 0.0
    %672 = vmatprep.subr.mxu0 0.0
    %673 = vmatpush1.msra.mxu0 0.0
    %674 = vmatprep.subr.mxu0 0.0
    %675 = vmatpush1.msra.mxu0 0.0
    %676 = vmatprep.subr.mxu0 0.0
    %677 = vmatpush1.msra.mxu0 0.0
    %678 = vmatprep.subr.mxu0 0.0
    %679 = vmatpush1.msra.mxu0 0.0
    %680 = vmatprep.subr.mxu0 0.0
    %681 = vmatpush1.msra.mxu0 0.0
    %682 = vmatprep.subr.mxu0 0.0
    %683 = vmatpush1.msra.mxu0 0.0
    %684 = vmatprep.subr.mxu0 0.0
    %685 = vmatpush1.msra.mxu0 0.0
    %686 = vmatprep.subr.mxu0 0.0
    %687 = vmatpush1.msra.mxu0 0.0
    %688 = vmatprep.subr.mxu0 0.0
    %689 = vmatpush1.msra.mxu0 0.0
    %690 = vmatprep.subr.mxu0 0.0
    %691 = vmatpush1.msra.mxu0 0.0
    %692 = vmatprep.subr.mxu0 0.0
    %693 = vmatpush1.msra.mxu0 0.0
    %694 = vmatprep.subr.mxu0 0.0
    %695 = vmatpush1.msra.mxu0 0.0
    %696 = vmatprep.subr.mxu0 0.0
    %697 = vmatpush1.msra.mxu0 0.0
    %698 = vmatprep.subr.mxu0 0.0
    %699 = vmatpush1.msra.mxu0 0.0
    %700 = vmatprep.subr.mxu0 0.0
    %701 = vmatpush1.msra.mxu0 0.0
    %702 = vmatprep.subr.mxu0 0.0
    %703 = vmatpush1.msra.mxu0 0.0
    %704 = vmatprep.subr.mxu0 0.0
    %705 = vmatpush1.msra.mxu0 0.0
    %706 = vmatprep.mubr.f32.mxu0 0.0
    %707 = vmatmul.mubr.f32.gmra.mrb[0].mxu0 %v304
    %v708 = vpop.f32.mrb[0].mxu0
    %v709 = vadd.f32 0.0, %v708
    %v710 = vpop.f32.mrb[0].mxu0
    %v711 = vadd.f32 0.0, %v710
    %712 = vmatprep.mubr.f32.mxu0 0.0
    %713 = vmatmul.mubr.f32.gmra.mrb[0].mxu0 %v307
    %v714 = vpop.f32.mrb[0].mxu0
    %v715 = vadd.f32 0.0, %v714
    %v716 = vpop.f32.mrb[0].mxu0
    %v717 = vadd.f32 0.0, %v716
    %718 = vmatprep.mubr.f32.mxu0 0.0
    %719 = vmatmul.mubr.f32.gmra.mrb[0].mxu0 %v310
    %v720 = vpop.f32.mrb[0].mxu0
    %v721 = vadd.f32 0.0, %v720
    %v722 = vpop.f32.mrb[0].mxu0
    %v723 = vadd.f32 0.0, %v722
    %724 = vdwg.mxu0
    %725 = vmatprep.subr.mxu0 %v246
    %726 = vmatpush1.msra.mxu0 %v245
    %727 = vmatprep.subr.mxu0 %v262
    %728 = vmatpush1.msra.mxu0 %v261
    %729 = vmatprep.subr.mxu0 %v278
    %730 = vmatpush1.msra.mxu0 %v277
    %731 = vmatprep.subr.mxu0 %v294
    %732 = vmatpush1.msra.mxu0 %v293
    %733 = vmatprep.subr.mxu0 0.0
    %734 = vmatpush1.msra.mxu0 0.0
    %735 = vmatprep.subr.mxu0 0.0
    %736 = vmatpush1.msra.mxu0 0.0
    %737 = vmatprep.subr.mxu0 0.0
    %738 = vmatpush1.msra.mxu0 0.0
    %739 = vmatprep.subr.mxu0 0.0
    %740 = vmatpush1.msra.mxu0 0.0
    %741 = vmatprep.subr.mxu0 0.0
    %742 = vmatpush1.msra.mxu0 0.0
    %743 = vmatprep.subr.mxu0 0.0
    %744 = vmatpush1.msra.mxu0 0.0
    %745 = vmatprep.subr.mxu0 0.0
    %746 = vmatpush1.msra.mxu0 0.0
    %747 = vmatprep.subr.mxu0 0.0
    %748 = vmatpush1.msra.mxu0 0.0
    %749 = vmatprep.subr.mxu0 0.0
    %750 = vmatpush1.msra.mxu0 0.0
    %751 = vmatprep.subr.mxu0 0.0
    %752 = vmatpush1.msra.mxu0 0.0
    %753 = vmatprep.subr.mxu0 0.0
    %754 = vmatpush1.msra.mxu0 0.0
    %755 = vmatprep.subr.mxu0 0.0
    %756 = vmatpush1.msra.mxu0 0.0
    %757 = vmatprep.subr.mxu0 0.0
    %758 = vmatpush1.msra.mxu0 0.0
    %759 = vmatprep.subr.mxu0 0.0
    %760 = vmatpush1.msra.mxu0 0.0
    %761 = vmatprep.subr.mxu0 0.0
    %762 = vmatpush1.msra.mxu0 0.0
    %763 = vmatprep.subr.mxu0 0.0
    %764 = vmatpush1.msra.mxu0 0.0
    %765 = vmatprep.subr.mxu0 0.0
    %766 = vmatpush1.msra.mxu0 0.0
    %767 = vmatprep.subr.mxu0 0.0
    %768 = vmatpush1.msra.mxu0 0.0
    %769 = vmatprep.subr.mxu0 0.0
    %770 = vmatpush1.msra.mxu0 0.0
    %771 = vmatprep.subr.mxu0 0.0
    %772 = vmatpush1.msra.mxu0 0.0
    %773 = vmatprep.subr.mxu0 0.0
    %774 = vmatpush1.msra.mxu0 0.0
    %775 = vmatprep.subr.mxu0 0.0
    %776 = vmatpush1.msra.mxu0 0.0
    %777 = vmatprep.subr.mxu0 0.0
    %778 = vmatpush1.msra.mxu0 0.0
    %779 = vmatprep.subr.mxu0 0.0
    %780 = vmatpush1.msra.mxu0 0.0
    %781 = vmatprep.subr.mxu0 0.0
    %782 = vmatpush1.msra.mxu0 0.0
    %783 = vmatprep.subr.mxu0 0.0
    %784 = vmatpush1.msra.mxu0 0.0
    %785 = vmatprep.subr.mxu0 0.0
    %786 = vmatpush1.msra.mxu0 0.0
    %787 = vmatprep.subr.mxu0 0.0
    %788 = vmatpush1.msra.mxu0 0.0
    %789 = vmatprep.mubr.f32.mxu0 0.0
    %790 = vmatmul.mubr.f32.gmra.mrb[0].mxu0 %v304
    %v791 = vpop.f32.mrb[0].mxu0
    %v792 = vadd.f32 0.0, %v791
    %v793 = vpop.f32.mrb[0].mxu0
    %v794 = vadd.f32 0.0, %v793
    %795 = vmatprep.mubr.f32.mxu0 0.0
    %796 = vmatmul.mubr.f32.gmra.mrb[0].mxu0 %v307
    %v797 = vpop.f32.mrb[0].mxu0
    %v798 = vadd.f32 0.0, %v797
    %v799 = vpop.f32.mrb[0].mxu0
    %v800 = vadd.f32 0.0, %v799
    %801 = vmatprep.mubr.f32.mxu0 0.0
    %802 = vmatmul.mubr.f32.gmra.mrb[0].mxu0 %v310
    %v803 = vpop.f32.mrb[0].mxu0
    %v804 = vadd.f32 0.0, %v803
    %v805 = vpop.f32.mrb[0].mxu0
    %v806 = vadd.f32 0.0, %v805
    %807 = vdwg.mxu0
    %808 = vmatprep.subr.mxu0 %v248
    %809 = vmatpush1.msra.mxu0 %v247
    %810 = vmatprep.subr.mxu0 %v264
    %811 = vmatpush1.msra.mxu0 %v263
    %812 = vmatprep.subr.mxu0 %v280
    %813 = vmatpush1.msra.mxu0 %v279
    %814 = vmatprep.subr.mxu0 %v296
    %815 = vmatpush1.msra.mxu0 %v295
    %816 = vmatprep.subr.mxu0 0.0
    %817 = vmatpush1.msra.mxu0 0.0
    %818 = vmatprep.subr.mxu0 0.0
    %819 = vmatpush1.msra.mxu0 0.0
    %820 = vmatprep.subr.mxu0 0.0
    %821 = vmatpush1.msra.mxu0 0.0
    %822 = vmatprep.subr.mxu0 0.0
    %823 = vmatpush1.msra.mxu0 0.0
    %824 = vmatprep.subr.mxu0 0.0
    %825 = vmatpush1.msra.mxu0 0.0
    %826 = vmatprep.subr.mxu0 0.0
    %827 = vmatpush1.msra.mxu0 0.0
    %828 = vmatprep.subr.mxu0 0.0
    %829 = vmatpush1.msra.mxu0 0.0
    %830 = vmatprep.subr.mxu0 0.0
    %831 = vmatpush1.msra.mxu0 0.0
    %832 = vmatprep.subr.mxu0 0.0
    %833 = vmatpush1.msra.mxu0 0.0
    %834 = vmatprep.subr.mxu0 0.0
    %835 = vmatpush1.msra.mxu0 0.0
    %836 = vmatprep.subr.mxu0 0.0
    %837 = vmatpush1.msra.mxu0 0.0
    %838 = vmatprep.subr.mxu0 0.0
    %839 = vmatpush1.msra.mxu0 0.0
    %840 = vmatprep.subr.mxu0 0.0
    %841 = vmatpush1.msra.mxu0 0.0
    %842 = vmatprep.subr.mxu0 0.0
    %843 = vmatpush1.msra.mxu0 0.0
    %844 = vmatprep.subr.mxu0 0.0
    %845 = vmatpush1.msra.mxu0 0.0
    %846 = vmatprep.subr.mxu0 0.0
    %847 = vmatpush1.msra.mxu0 0.0
    %848 = vmatprep.subr.mxu0 0.0
    %849 = vmatpush1.msra.mxu0 0.0
    %850 = vmatprep.subr.mxu0 0.0
    %851 = vmatpush1.msra.mxu0 0.0
    %852 = vmatprep.subr.mxu0 0.0
    %853 = vmatpush1.msra.mxu0 0.0
    %854 = vmatprep.subr.mxu0 0.0
    %855 = vmatpush1.msra.mxu0 0.0
    %856 = vmatprep.subr.mxu0 0.0
    %857 = vmatpush1.msra.mxu0 0.0
    %858 = vmatprep.subr.mxu0 0.0
    %859 = vmatpush1.msra.mxu0 0.0
    %860 = vmatprep.subr.mxu0 0.0
    %861 = vmatpush1.msra.mxu0 0.0
    %862 = vmatprep.subr.mxu0 0.0
    %863 = vmatpush1.msra.mxu0 0.0
    %864 = vmatprep.subr.mxu0 0.0
    %865 = vmatpush1.msra.mxu0 0.0
    %866 = vmatprep.subr.mxu0 0.0
    %867 = vmatpush1.msra.mxu0 0.0
    %868 = vmatprep.subr.mxu0 0.0
    %869 = vmatpush1.msra.mxu0 0.0
    %870 = vmatprep.subr.mxu0 0.0
    %871 = vmatpush1.msra.mxu0 0.0
    %872 = vmatprep.mubr.f32.mxu0 0.0
    %873 = vmatmul.mubr.f32.gmra.mrb[0].mxu0 %v304
    %v874 = vpop.f32.mrb[0].mxu0
    %v875 = vadd.f32 0.0, %v874
    %v876 = vpop.f32.mrb[0].mxu0
    %v877 = vadd.f32 0.0, %v876
    %878 = vmatprep.mubr.f32.mxu0 0.0
    %879 = vmatmul.mubr.f32.gmra.mrb[0].mxu0 %v307
    %v880 = vpop.f32.mrb[0].mxu0
    %v881 = vadd.f32 0.0, %v880
    %v882 = vpop.f32.mrb[0].mxu0
    %v883 = vadd.f32 0.0, %v882
    %884 = vmatprep.mubr.f32.mxu0 0.0
    %885 = vmatmul.mubr.f32.gmra.mrb[0].mxu0 %v310
    %v886 = vpop.f32.mrb[0].mxu0
    %v887 = vadd.f32 0.0, %v886
    %v888 = vpop.f32.mrb[0].mxu0
    %v889 = vadd.f32 0.0, %v888
    %890 = vdwg.mxu0
    %891 = vmatprep.subr.mxu0 %v250
    %892 = vmatpush1.msra.mxu0 %v249
    %893 = vmatprep.subr.mxu0 %v266
    %894 = vmatpush1.msra.mxu0 %v265
    %895 = vmatprep.subr.mxu0 %v282
    %896 = vmatpush1.msra.mxu0 %v281
    %897 = vmatprep.subr.mxu0 %v298
    %898 = vmatpush1.msra.mxu0 %v297
    %899 = vmatprep.subr.mxu0 0.0
    %900 = vmatpush1.msra.mxu0 0.0
    %901 = vmatprep.subr.mxu0 0.0
    %902 = vmatpush1.msra.mxu0 0.0
    %903 = vmatprep.subr.mxu0 0.0
    %904 = vmatpush1.msra.mxu0 0.0
    %905 = vmatprep.subr.mxu0 0.0
    %906 = vmatpush1.msra.mxu0 0.0
    %907 = vmatprep.subr.mxu0 0.0
    %908 = vmatpush1.msra.mxu0 0.0
    %909 = vmatprep.subr.mxu0 0.0
    %910 = vmatpush1.msra.mxu0 0.0
    %911 = vmatprep.subr.mxu0 0.0
    %912 = vmatpush1.msra.mxu0 0.0
    %913 = vmatprep.subr.mxu0 0.0
    %914 = vmatpush1.msra.mxu0 0.0
    %915 = vmatprep.subr.mxu0 0.0
    %916 = vmatpush1.msra.mxu0 0.0
    %917 = vmatprep.subr.mxu0 0.0
    %918 = vmatpush1.msra.mxu0 0.0
    %919 = vmatprep.subr.mxu0 0.0
    %920 = vmatpush1.msra.mxu0 0.0
    %921 = vmatprep.subr.mxu0 0.0
    %922 = vmatpush1.msra.mxu0 0.0
    %923 = vmatprep.subr.mxu0 0.0
    %924 = vmatpush1.msra.mxu0 0.0
    %925 = vmatprep.subr.mxu0 0.0
    %926 = vmatpush1.msra.mxu0 0.0
    %927 = vmatprep.subr.mxu0 0.0
    %928 = vmatpush1.msra.mxu0 0.0
    %929 = vmatprep.subr.mxu0 0.0
    %930 = vmatpush1.msra.mxu0 0.0
    %931 = vmatprep.subr.mxu0 0.0
    %932 = vmatpush1.msra.mxu0 0.0
    %933 = vmatprep.subr.mxu0 0.0
    %934 = vmatpush1.msra.mxu0 0.0
    %935 = vmatprep.subr.mxu0 0.0
    %936 = vmatpush1.msra.mxu0 0.0
    %937 = vmatprep.subr.mxu0 0.0
    %938 = vmatpush1.msra.mxu0 0.0
    %939 = vmatprep.subr.mxu0 0.0
    %940 = vmatpush1.msra.mxu0 0.0
    %941 = vmatprep.subr.mxu0 0.0
    %942 = vmatpush1.msra.mxu0 0.0
    %943 = vmatprep.subr.mxu0 0.0
    %944 = vmatpush1.msra.mxu0 0.0
    %945 = vmatprep.subr.mxu0 0.0
    %946 = vmatpush1.msra.mxu0 0.0
    %947 = vmatprep.subr.mxu0 0.0
    %948 = vmatpush1.msra.mxu0 0.0
    %949 = vmatprep.subr.mxu0 0.0
    %950 = vmatpush1.msra.mxu0 0.0
    %951 = vmatprep.subr.mxu0 0.0
    %952 = vmatpush1.msra.mxu0 0.0
    %953 = vmatprep.subr.mxu0 0.0
    %954 = vmatpush1.msra.mxu0 0.0
    %955 = vmatprep.mubr.f32.mxu0 0.0
    %956 = vmatmul.mubr.f32.gmra.mrb[0].mxu0 %v304
    %v957 = vpop.f32.mrb[0].mxu0
    %v958 = vadd.f32 0.0, %v957
    %v959 = vpop.f32.mrb[0].mxu0
    %v960 = vadd.f32 0.0, %v959
    %961 = vmatprep.mubr.f32.mxu0 0.0
    %962 = vmatmul.mubr.f32.gmra.mrb[0].mxu0 %v307
    %v963 = vpop.f32.mrb[0].mxu0
    %v964 = vpop.f32.mrb[0].mxu0
    %965 = vmatprep.mubr.f32.mxu0 0.0
    %966 = vmatmul.mubr.f32.gmra.mrb[0].mxu0 %v310
    %v967 = vpop.f32.mrb[0].mxu0
    %v968 = vadd.f32 0.0, %v967
    %v969 = vpop.f32.mrb[0].mxu0
    %v970 = vadd.f32 0.0, %v969
    %971 = vdwg.mxu0
    %v972 = vld [vmem:[%s2] sm:$0xff]
    %974 = vset.pattern.permute.xlu0 0
    %975 = vperm.xlu0 %974, %v972
    %v976 = vpop.permute.xlu0 %975
    %v978 = vadd.f32 %v379, %v976
    %v979 = vadd.f32 %v381, %v976
    %v980 = vadd.f32 %v460, %v976
    %v981 = vadd.f32 %v462, %v976
    %v982 = vadd.f32 %v543, %v976
    %v983 = vadd.f32 %v545, %v976
    %v984 = vadd.f32 %v626, %v976
    %v985 = vadd.f32 %v628, %v976
    %v986 = vadd.f32 %v709, %v976
    %v987 = vadd.f32 %v711, %v976
    %v988 = vadd.f32 %v792, %v976
    %v989 = vadd.f32 %v794, %v976
    %v990 = vadd.f32 %v875, %v976
    %v991 = vadd.f32 %v877, %v976
    %v992 = vadd.f32 %v958, %v976
    %v993 = vadd.f32 %v960, %v976
    %v994 = vmax.f32 %v978, 0.0
    %v995 = vmax.f32 %v979, 0.0
    %v996 = vmax.f32 %v980, 0.0
    %v997 = vmax.f32 %v981, 0.0
    %v998 = vmax.f32 %v982, 0.0
    %v999 = vmax.f32 %v983, 0.0
    %v1000 = vmax.f32 %v984, 0.0
    %v1001 = vmax.f32 %v985, 0.0
    %v1002 = vmax.f32 %v986, 0.0
    %v1003 = vmax.f32 %v987, 0.0
    %v1004 = vmax.f32 %v988, 0.0
    %v1005 = vmax.f32 %v989, 0.0
    %v1006 = vmax.f32 %v990, 0.0
    %v1007 = vmax.f32 %v991, 0.0
    %v1008 = vmax.f32 %v992, 0.0
    %v1009 = vmax.f32 %v993, 0.0
    %v1010 = vmax.f32 %v994, %v996
    %v1011 = vmax.f32 %v995, %v997
    %v1012 = vmax.f32 %v1010, %v998
    %v1013 = vmax.f32 %v1011, %v999
    %v1014 = vmax.f32 %v1012, %v1000
    %v1015 = vmax.f32 %v1013, %v1001
    %v1016 = vmax.f32 %v1014, %v1002
    %v1017 = vmax.f32 %v1015, %v1003
    %v1018 = vmax.f32 %v1016, %v1004
    %v1019 = vmax.f32 %v1017, %v1005
    %v1020 = vmax.f32 %v1018, %v1006
    %v1021 = vmax.f32 %v1019, %v1007
    %v1022 = vmax.f32 %v1020, %v1008
    %v1023 = vmax.f32 %v1021, %v1009
    %v1024 = vld [vmem:[%s3] sm:$0xff]
    %v1025 = vadd.f32 %v385, %v472
    %v1026 = vadd.f32 %v387, %v474
    %1028 = vset.pattern.permute.xlu0 0
    %1029 = vperm.xlu0 %1028, %v1024
    %v1030 = vpop.permute.xlu0 %1029
    %v1032 = vadd.f32 %v1025, %v1030
    %v1033 = vadd.f32 %v1026, %v1030
    %v1034 = vmax.f32 %v1032, 0.0
    %v1035 = vmax.f32 %v1033, 0.0
    %v1036 = vadd.f32 %v466, %v555
    %v1037 = vadd.f32 %v468, %v557
    %v1038 = vadd.f32 %v1036, %v1030
    %v1039 = vadd.f32 %v1037, %v1030
    %v1040 = vmax.f32 %v1038, 0.0
    %v1041 = vmax.f32 %v1039, 0.0
    %v1042 = vmax.f32 %v1034, %v1040
    %v1043 = vmax.f32 %v1035, %v1041
    %v1044 = vadd.f32 %v549, %v638
    %v1045 = vadd.f32 %v551, %v640
    %v1046 = vadd.f32 %v1044, %v1030
    %v1047 = vadd.f32 %v1045, %v1030
    %v1048 = vmax.f32 %v1046, 0.0
    %v1049 = vmax.f32 %v1047, 0.0
    %v1050 = vmax.f32 %v1042, %v1048
    %v1051 = vmax.f32 %v1043, %v1049
    %v1052 = vadd.f32 %v632, %v721
    %v1053 = vadd.f32 %v634, %v723
    %v1054 = vadd.f32 %v1052, %v1030
    %v1055 = vadd.f32 %v1053, %v1030
    %v1056 = vmax.f32 %v1054, 0.0
    %v1057 = vmax.f32 %v1055, 0.0
    %v1058 = vmax.f32 %v1050, %v1056
    %v1059 = vmax.f32 %v1051, %v1057
    %v1060 = vadd.f32 %v715, %v804
    %v1061 = vadd.f32 %v717, %v806
    %v1062 = vadd.f32 %v1060, %v1030
    %v1063 = vadd.f32 %v1061, %v1030
    %v1064 = vmax.f32 %v1062, 0.0
    %v1065 = vmax.f32 %v1063, 0.0
    %v1066 = vmax.f32 %v1058, %v1064
    %v1067 = vmax.f32 %v1059, %v1065
    %v1068 = vadd.f32 %v798, %v887
    %v1069 = vadd.f32 %v800, %v889
    %v1070 = vadd.f32 %v1068, %v1030
    %v1071 = vadd.f32 %v1069, %v1030
    %v1072 = vmax.f32 %v1070, 0.0
    %v1073 = vmax.f32 %v1071, 0.0
    %v1074 = vmax.f32 %v1066, %v1072
    %v1075 = vmax.f32 %v1067, %v1073
    %v1076 = vadd.f32 %v881, %v968
    %v1077 = vadd.f32 %v883, %v970
    %v1078 = vadd.f32 %v1076, %v1030
    %v1079 = vadd.f32 %v1077, %v1030
    %v1080 = vmax.f32 %v1078, 0.0
    %v1081 = vmax.f32 %v1079, 0.0
    %v1082 = vmax.f32 %v1074, %v1080
    %v1083 = vmax.f32 %v1075, %v1081
    %v1084 = vld [vmem:[%s4] sm:$0x3]
    %v1085 = vld [vmem:[%s5] sm:$0x3]
    %1087 = vset.pattern.permute.xlu0 0
    %1088 = vperm.xlu0 %1087, %v1085
    %v1089 = vpop.permute.xlu0 %1088
    %v1092 = vsel %vm302, %v1084, 0
    %1094 = vmatprep.subr.mxu0 0.0
    %1095 = vmatpush1.msra.mxu0 %v1022
    %1096 = vmatprep.subr.mxu0 0.0
    %1097 = vmatpush1.msra.mxu0 %v1082
    %1098 = vmatprep.subr.mxu0 0.0
    %1099 = vmatpush1.msra.mxu0 %v1023
    %1100 = vmatprep.subr.mxu0 0.0
    %1101 = vmatpush1.msra.mxu0 %v1083
    %1102 = vmatprep.subr.mxu0 0.0
    %1103 = vmatpush1.msra.mxu0 0.0
    %1104 = vmatprep.subr.mxu0 0.0
    %1105 = vmatpush1.msra.mxu0 0.0
    %1106 = vmatprep.subr.mxu0 0.0
    %1107 = vmatpush1.msra.mxu0 0.0
    %1108 = vmatprep.subr.mxu0 0.0
    %1109 = vmatpush1.msra.mxu0 0.0
    %1110 = vmatprep.subr.mxu0 0.0
    %1111 = vmatpush1.msra.mxu0 0.0
    %1112 = vmatprep.subr.mxu0 0.0
    %1113 = vmatpush1.msra.mxu0 0.0
    %1114 = vmatprep.subr.mxu0 0.0
    %1115 = vmatpush1.msra.mxu0 0.0
    %1116 = vmatprep.subr.mxu0 0.0
    %1117 = vmatpush1.msra.mxu0 0.0
    %1118 = vmatprep.subr.mxu0 0.0
    %1119 = vmatpush1.msra.mxu0 0.0
    %1120 = vmatprep.subr.mxu0 0.0
    %1121 = vmatpush1.msra.mxu0 0.0
    %1122 = vmatprep.subr.mxu0 0.0
    %1123 = vmatpush1.msra.mxu0 0.0
    %1124 = vmatprep.subr.mxu0 0.0
    %1125 = vmatpush1.msra.mxu0 0.0
    %1126 = vmatprep.subr.mxu0 0.0
    %1127 = vmatpush1.msra.mxu0 0.0
    %1128 = vmatprep.subr.mxu0 0.0
    %1129 = vmatpush1.msra.mxu0 0.0
    %1130 = vmatprep.subr.mxu0 0.0
    %1131 = vmatpush1.msra.mxu0 0.0
    %1132 = vmatprep.subr.mxu0 0.0
    %1133 = vmatpush1.msra.mxu0 0.0
    %1134 = vmatprep.subr.mxu0 0.0
    %1135 = vmatpush1.msra.mxu0 0.0
    %1136 = vmatprep.subr.mxu0 0.0
    %1137 = vmatpush1.msra.mxu0 0.0
    %1138 = vmatprep.subr.mxu0 0.0
    %1139 = vmatpush1.msra.mxu0 0.0
    %1140 = vmatprep.subr.mxu0 0.0
    %1141 = vmatpush1.msra.mxu0 0.0
    %1142 = vmatprep.subr.mxu0 0.0
    %1143 = vmatpush1.msra.mxu0 0.0
    %1144 = vmatprep.subr.mxu0 0.0
    %1145 = vmatpush1.msra.mxu0 0.0
    %1146 = vmatprep.subr.mxu0 0.0
    %1147 = vmatpush1.msra.mxu0 0.0
    %1148 = vmatprep.subr.mxu0 0.0
    %1149 = vmatpush1.msra.mxu0 0.0
    %1150 = vmatprep.subr.mxu0 0.0
    %1151 = vmatpush1.msra.mxu0 0.0
    %1152 = vmatprep.subr.mxu0 0.0
    %1153 = vmatpush1.msra.mxu0 0.0
    %1154 = vmatprep.subr.mxu0 0.0
    %1155 = vmatpush1.msra.mxu0 0.0
    %1156 = vmatprep.subr.mxu0 0.0
    %1157 = vmatpush1.msra.mxu0 0.0
    %1158 = vmatprep.mubr.f32.mxu0 0.0
    %1159 = vmatmul.mubr.f32.gmra.mrb[0].mxu0 %v1092
    %v1160 = vpop.f32.mrb[0].mxu0
    %v1161 = vadd.f32 %v1089, %v1160
    %v1162 = vpop.f32.mrb[0].mxu0
    %1163 = vdwg.mxu0
    %vm1164 = vcmask 1041408
    %v1165 = vsel %vm1164, %v1161, -inf
    %v1166 = vrot.slane %v1165, 4
    %v1167 = vmax.f32 %v1165, %v1166
    %v1168 = vrot.slane %v1167, 2
    %v1169 = vmax.f32 %v1167, %v1168
    %v1170 = vrot.slane %v1169, 1
    %v1171 = vmax.f32 %v1169, %v1170
    %v1172 = vsub.f32 %v1161, %v1171
    %v1173 = vmul.f32 %v1172, 1.442695
    %v1174 = vpow.pop %v1173
    %v1175 = vsel %vm1164, %v1174, 0.0
    %v1176 = vrot.slane %v1175, 4
    %v1177 = vadd.f32 %v1175, %v1176
    %v1178 = vrot.slane %v1177, 2
    %v1179 = vadd.f32 %v1177, %v1178
    %v1180 = vrot.slane %v1179, 1
    %v1181 = vadd.f32 %v1179, %v1180
    %v1182 = vlog2.pop %v1181
    %v1183 = vmul.f32 %v1182, 0.6931472
    %v1184 = vadd.f32 %v1171, %v1183
    %v1185 = vsub.f32 %v1161, %v1184
    %1186 = vst [vmem:[#allocation5] sm:$0x3] %v1185
    // Predicated region
    $region30: #{tpu_custom_call.1} parent=1 // pred_check
      _
    $region31: #{tpu_custom_call.1} parent=1 // pred_check_branch
      %1188 = sbr.rel (0) target = $region33
    $region32: #{tpu_custom_call.1} parent=1 // pred_region
      %s1190 = ssub.s32 32, 32
      %1191 = vsyncadd [#allocation4], %s1190
      %s1193 = sshll.u32 [#allocation5], 4
      %s1194 = int_to_ptr.vmem [resolvable:$true] %s1193
      %1196 = dma.vmem_to_hbm [thread:$0]  %s1194, 32, %s6, [#allocation4]
    $region33: #{tpu_custom_call.1} parent=1 // pred_fallthru
      _
    // Predicated region
    $region34: #{tpu_custom_call.1} parent=1 // pred_check
      _
    $region35: #{tpu_custom_call.1} parent=1 // pred_check_branch
      %1198 = sbr.rel (0) target = $region37
    $region36: #{tpu_custom_call.1} parent=1 // pred_region
      %1199 = dma.done [#allocation4], 32
    $region37: #{tpu_custom_call.1} parent=1 // pred_fallthru
      _
    %1200 = vsyncpa [#allocation3], 1
    %1201 = vsyncpa [#allocation4], 1

</llo_original>
